<compile_context>
chip_gen: v7x
topology: tpu7x:2x2x1
jax: 0.10.0
libtpu: 0.0.40
codegen_flags: <defaults>
</compile_context>

<pallas_src>
import numpy as np
import jax
import jax.numpy as jnp
from jax import lax
from jax.experimental import pallas as pl
from jax.experimental.pallas import tpu as pltpu


# ----------------------------------------------------------------------------
# db4 filter bank (pywt conventions: rec_lo = scaling filter, dec_lo = reversed,
# rec_hi = qmf(rec_lo), dec_hi = reversed rec_hi)
# ----------------------------------------------------------------------------
_REC_LO = np.array(
    [0.23037781330885523, 0.7148465705525415, 0.6308807679295904,
     -0.02798376941698385, -0.18703481171888114, 0.030841381835986965,
     0.032883011666982945, -0.010597401784997278], dtype=np.float64)
_DEC_LO = _REC_LO[::-1].copy()
_REC_HI = _REC_LO[::-1].copy()
_REC_HI[1::2] *= -1.0
_DEC_HI = _REC_HI[::-1].copy()


def _reflect(x, minx, maxx):
    """Half-sample symmetric reflection of indices (pytorch_wavelets.reflect)."""
    x = np.asarray(x, dtype=np.float64)
    rng = maxx - minx
    rng_by_2 = 2.0 * rng
    mod = np.fmod(x - minx, rng_by_2)
    normed = np.where(mod < 0, mod + rng_by_2, mod)
    out = np.where(normed >= rng, rng_by_2 - normed, normed) + minx
    return out.astype(np.int64)


def _symmetric_pad_idx(n, pad_lo, pad_hi):
    return _reflect(np.arange(-pad_lo, n + pad_hi), -0.5, n - 0.5)


def _afb1d(x, dec_lo, dec_hi, dim):
    """Analysis filter bank along `dim` (2 or 3), pywt 'symmetric' mode.

    Returns (B, 2*C, H', W') with per-input-channel interleave [lo, hi]."""
    C = x.shape[1]
    n = x.shape[dim]
    filt_len = dec_lo.shape[0]
    outsize = (n + filt_len - 1) // 2           # pywt.dwt_coeff_len (symmetric)
    p = 2 * (outsize - 1) - n + filt_len
    idx = _symmetric_pad_idx(n, p // 2, (p + 1) // 2)
    xp = jnp.take(x, jnp.asarray(idx), axis=dim)

    # F.conv2d is cross-correlation and pytorch_wavelets pre-reverses the dec
    # filters, so correlate with the reversed dec filters here too.
    h0r = jnp.asarray(dec_lo[::-1].copy(), jnp.float32)
    h1r = jnp.asarray(dec_hi[::-1].copy(), jnp.float32)
    filt = jnp.stack([h0r, h1r], axis=0)        # (2, L)
    if dim == 2:
        kernel = filt.reshape(2, 1, filt_len, 1)
        strides = (2, 1)
    else:
        kernel = filt.reshape(2, 1, 1, filt_len)
        strides = (1, 2)
    kernel = jnp.tile(kernel, (C, 1, 1, 1))     # (2C, 1, kh, kw), depthwise
    return lax.conv_general_dilated(
        xp, kernel, window_strides=strides, padding='VALID',
        feature_group_count=C, dimension_numbers=('NCHW', 'OIHW', 'NCHW'))


def _dwt_level(x):
    b, c = x.shape[0], x.shape[1]
    lohi = _afb1d(x, _DEC_LO, _DEC_HI, dim=3)   # filter rows (width)
    y = _afb1d(lohi, _DEC_LO, _DEC_HI, dim=2)   # filter cols (height)
    y = y.reshape(b, c, 4, y.shape[-2], y.shape[-1])
    return y[:, :, 0], y[:, :, 1:]              # ll, highs (B, C, 3, h, w)


def dwt2d(x, level):
    """Matches pytorch_wavelets DWTForward(J=level, mode='symmetric', wave='db4')."""
    yh = []
    ll = x
    for _ in range(level):
        ll, high = _dwt_level(ll)
        yh.append(high)
    return ll, yh


def _sfb1d(lo, hi, rec_lo, rec_hi, dim):
    """Synthesis filter bank along `dim`; equivalent to torch conv_transpose2d
    with stride 2, padding L-2 along `dim`, groups=C."""
    C = lo.shape[1]
    filt_len = rec_lo.shape[0]
    edge = 1                                    # = L - 1 - (L - 2)
    g0f = jnp.asarray(rec_lo[::-1].copy(), jnp.float32)  # flip -> true convolution
    g1f = jnp.asarray(rec_hi[::-1].copy(), jnp.float32)
    if dim == 2:
        k0 = jnp.tile(g0f.reshape(1, 1, filt_len, 1), (C, 1, 1, 1))
        k1 = jnp.tile(g1f.reshape(1, 1, filt_len, 1), (C, 1, 1, 1))
        lhs_dil = (2, 1)
        padding = [(edge, edge), (0, 0)]
    else:
        k0 = jnp.tile(g0f.reshape(1, 1, 1, filt_len), (C, 1, 1, 1))
        k1 = jnp.tile(g1f.reshape(1, 1, 1, filt_len), (C, 1, 1, 1))
        lhs_dil = (1, 2)
        padding = [(0, 0), (edge, edge)]

    def tconv(z, k):
        return lax.conv_general_dilated(
            z, k, window_strides=(1, 1), padding=padding, lhs_dilation=lhs_dil,
            feature_group_count=C, dimension_numbers=('NCHW', 'OIHW', 'NCHW'))

    return tconv(lo, k0) + tconv(hi, k1)


def _idwt_level(ll, highs):
    lh = highs[:, :, 0]
    hl = highs[:, :, 1]
    hh = highs[:, :, 2]
    lo = _sfb1d(ll, lh, _REC_LO, _REC_HI, dim=2)
    hi = _sfb1d(hl, hh, _REC_LO, _REC_HI, dim=2)
    return _sfb1d(lo, hi, _REC_LO, _REC_HI, dim=3)


def idwt2d(yl, yh):
    """Matches pytorch_wavelets DWTInverse(mode='symmetric', wave='db4')."""
    ll = yl
    for h in yh[::-1]:
        if ll.shape[-2] > h.shape[-2]:
            ll = ll[..., :-1, :]
        if ll.shape[-1] > h.shape[-1]:
            ll = ll[..., :-1]
        ll = _idwt_level(ll, h)
    return ll


# ----------------------------------------------------------------------------
# Pallas kernel: fused mul2d for all four wavelet branches.
#   out[b, o, l] = sum_i x[b, i, l] * w[i, o, l]
# where l = flattened (branch, modes1, modes2), zero-padded to a lane multiple.
# ----------------------------------------------------------------------------
def _wave_mul2d_kernel(x_ref, w_ref, o_ref):
    # x_ref: (1, Cin, Lp)   one batch element, all branches, lane-dense
    # w_ref: (Cin, Tco, Lp) resident weight slab (constant index along batch axis)
    # o_ref: (1, Tco, Lp)
    cin = w_ref.shape[0]
    x = x_ref[0]                                  # (Cin, Lp), loaded once
    # Explicit accumulation over the (static, small) Cin axis: avoids the large
    # (Cin, Tco, Lp) broadcast temporary; stays pure VPU work (per-lane weights,
    # so the MXU cannot help here).
    acc = x[0:1, :] * w_ref[0]                    # (Tco, Lp), float32
    for i in range(1, cin):
        acc = acc + x[i:i + 1, :] * w_ref[i]
    o_ref[0] = acc.astype(o_ref.dtype)


def _pick_cout_tile(cin, cout, lp, budget_bytes=12 << 20):
    """Largest Cout tile (cout itself, or a multiple-of-8 divisor) whose resident
    f32 weight block fits the VMEM budget (keeps v7x's smaller VMEM happy once
    the block is double-buffered)."""
    def w_bytes(t):
        return cin * t * lp * 4
    if w_bytes(cout) <= budget_bytes:
        return cout
    cands = [d for d in range(8, cout, 8) if cout % d == 0]
    for t in sorted(cands, reverse=True):
        if w_bytes(t) <= budget_bytes:
            return t
    return min(cands) if cands else cout


def pack_weights(w1, w2, w3, w4):
    """Fuse the 4 per-branch weight tensors (Cin, Cout, M1, M2) into a single
    lane-dense (Cin, Cout, Lp) slab: branches concatenated along the flattened
    spatial axis, zero-padded to a multiple of 128."""
    cin, cout, m1, m2 = w1.shape
    s = m1 * m2
    l = 4 * s
    lp = ((l + 127) // 128) * 128
    wf = jnp.stack([w1, w2, w3, w4], axis=2)      # (Cin, Cout, 4, M1, M2)
    wf = wf.reshape(cin, cout, l)
    if lp != l:
        wf = jnp.pad(wf, ((0, 0), (0, 0), (0, lp - l)))
    return wf


def fused_mul2d(x_ft, x_high, w_fused):
    """Single Pallas call implementing all four einsum('bixy,ioxy->boxy') branches.

    x_ft:    (B, Cin, M1, M2)        ll coefficients
    x_high:  (B, Cin, 3, M1, M2)     last-level (lh, hl, hh) coefficients
    w_fused: (Cin, Cout, Lp)         output of pack_weights()
    Returns (out_ll (B,Cout,M1,M2), out_high (B,Cout,3,M1,M2)).
    """
    B, Cin, M1, M2 = x_ft.shape
    Cout = w_fused.shape[1]
    Lp = w_fused.shape[2]
    S = M1 * M2
    L = 4 * S

    # Lane-dense input slab: (B, Cin, Lp) with the 4 branches along the lane axis.
    xs = jnp.concatenate([x_ft[:, :, None], x_high], axis=2)   # (B, Cin, 4, M1, M2)
    xs = xs.reshape(B, Cin, L)
    if Lp != L:
        xs = jnp.pad(xs, ((0, 0), (0, 0), (0, Lp - L)))

    tco = _pick_cout_tile(Cin, Cout, Lp)
    n_co = Cout // tco

    # Scoped-VMEM budget (v5e default is only 16 MiB): double-buffered x/w/out
    # blocks plus a little slack for the in-register accumulator. Cap at 48 MiB
    # so v7x's 64 MiB physical VMEM keeps headroom.
    x_blk = Cin * Lp * 4
    w_blk = Cin * tco * Lp * 4
    o_blk = tco * Lp * 4
    needed = 2 * (x_blk + w_blk + o_blk) + o_blk
    vmem_limit = int(min(48 << 20, max(2 * needed, 32 << 20)))

    out = pl.pallas_call(
        _wave_mul2d_kernel,
        out_shape=jax.ShapeDtypeStruct((B, Cout, Lp), x_ft.dtype),
        grid=(n_co, B),
        in_specs=[
            # x: new block per (innermost) batch step
            pl.BlockSpec((1, Cin, Lp), lambda o, b: (b, 0, 0)),
            # w: constant along the inner batch axis -> fetched once per Cout tile
            pl.BlockSpec((Cin, tco, Lp), lambda o, b: (0, o, 0)),
        ],
        out_specs=pl.BlockSpec((1, tco, Lp), lambda o, b: (b, o, 0)),
        compiler_params=pltpu.CompilerParams(
            dimension_semantics=("parallel", "parallel"),
            vmem_limit_bytes=vmem_limit),
    )(xs, w_fused)

    out = out[:, :, :L].reshape(B, Cout, 4, M1, M2)
    return out[:, :, 0], out[:, :, 1:]


# ----------------------------------------------------------------------------
# WaveConv2d
# ----------------------------------------------------------------------------
class WaveConv2d:
    def __init__(self, in_channels, out_channels, level, dummy, key):
        self.in_channels = in_channels
        self.out_channels = out_channels
        self.level = level
        mode_data, _ = dwt2d(dummy, level)
        self.modes1 = int(mode_data.shape[-2])
        self.modes2 = int(mode_data.shape[-1])
        scale = 1.0 / (in_channels * out_channels)
        shape = (in_channels, out_channels, self.modes1, self.modes2)
        ks = jax.random.split(key, 4)
        # torch.rand -> uniform [0, 1)
        self.weights1 = scale * jax.random.uniform(ks[0], shape, jnp.float32)
        self.weights2 = scale * jax.random.uniform(ks[1], shape, jnp.float32)
        self.weights3 = scale * jax.random.uniform(ks[2], shape, jnp.float32)
        self.weights4 = scale * jax.random.uniform(ks[3], shape, jnp.float32)
        # Pre-fused, lane-dense, padded weight slab (built once, not per call).
        self.w_fused = pack_weights(self.weights1, self.weights2,
                                    self.weights3, self.weights4)

    def __call__(self, x):
        x_ft, x_coeff = dwt2d(x, self.level)
        out_ft, out_high = fused_mul2d(x_ft, x_coeff[-1], self.w_fused)
        x_coeff = x_coeff[:-1] + [out_high]
        return idwt2d(out_ft, x_coeff)


if __name__ == "__main__":
    key = jax.random.PRNGKey(0)
    k_x, k_w = jax.random.split(key)
    B, C, H, W = 2, 4, 16, 16
    x = jax.random.normal(k_x, (B, C, H, W), dtype=jnp.float32)
    dummy = jnp.zeros((1, C, H, W), dtype=jnp.float32)

    layer = WaveConv2d(in_channels=C, out_channels=C, level=2, dummy=dummy, key=k_w)

    # --- sanity check: fused Pallas kernel vs. plain einsum reference ---
    x_ft, x_coeff = dwt2d(x, layer.level)
    out_ft, out_high = fused_mul2d(x_ft, x_coeff[-1], layer.w_fused)
    out_ft = jax.block_until_ready(out_ft)
    ref_ft = jnp.einsum('bixy,ioxy->boxy', x_ft, layer.weights1,
                        precision=lax.Precision.HIGHEST)
    np.testing.assert_allclose(np.asarray(out_ft), np.asarray(ref_ft),
                               rtol=1e-5, atol=1e-6)
    for branch, w in enumerate([layer.weights2, layer.weights3, layer.weights4]):
        ref_b = jnp.einsum('bixy,ioxy->boxy', x_coeff[-1][:, :, branch], w,
                           precision=lax.Precision.HIGHEST)
        np.testing.assert_allclose(np.asarray(out_high[:, :, branch]),
                                   np.asarray(ref_b), rtol=1e-5, atol=1e-6)

    # --- full forward pass ---
    y = layer(x)
    y = jax.block_until_ready(y)
    assert y.shape == (B, C, H, W), y.shape
    assert bool(jnp.all(jnp.isfinite(y)))
    print("KERNEL_OK")
</pallas_src>

<mosaic_0001>
module attributes {stable_mosaic.version = 11 : i64} {
  func.func @_wave_mul2d_kernel(%arg0: i32, %arg1: i32, %arg2: memref<1x4x384xf32, #tpu.memory_space<vmem>>, %arg3: memref<4x4x384xf32, #tpu.memory_space<vmem>>, %arg4: memref<1x4x384xf32, #tpu.memory_space<vmem>>) attributes {dimension_semantics = [#tpu.dimension_semantics<parallel>, #tpu.dimension_semantics<parallel>], iteration_bounds = array<i64: 1, 2>, scalar_prefetch = 0 : i64, scratch_operands = 0 : i64, tpu.core_type = #tpu.core_type<tc>, window_params = [{transform_indices = @transform_0, window_bounds = array<i64: 1, 4, 384>}, {transform_indices = @transform_1, window_bounds = array<i64: 4, 4, 384>}, {transform_indices = @transform_2, window_bounds = array<i64: 1, 4, 384>}]} {
    %c0 = arith.constant 0 : index
    %c0_0 = arith.constant 0 : index
    %c0_1 = arith.constant 0 : index
    %0 = vector.load %arg2[%c0, %c0_0, %c0_1] : memref<1x4x384xf32, #tpu.memory_space<vmem>>, vector<1x4x384xf32>
    %1 = vector.shape_cast %0 : vector<1x4x384xf32> to vector<4x384xf32>
    %2 = vector.extract_strided_slice %1 {offsets = [0, 0], sizes = [1, 384], strides = [1, 1]} : vector<4x384xf32> to vector<1x384xf32>
    %c0_2 = arith.constant 0 : index
    %c0_3 = arith.constant 0 : index
    %c0_4 = arith.constant 0 : index
    %3 = vector.load %arg3[%c0_2, %c0_3, %c0_4] : memref<4x4x384xf32, #tpu.memory_space<vmem>>, vector<1x4x384xf32>
    %4 = vector.shape_cast %3 : vector<1x4x384xf32> to vector<4x384xf32>
    %5 = vector.broadcast %2 : vector<1x384xf32> to vector<4x384xf32>
    %6 = arith.mulf %5, %4 : vector<4x384xf32>
    %7 = vector.extract_strided_slice %1 {offsets = [1, 0], sizes = [1, 384], strides = [1, 1]} : vector<4x384xf32> to vector<1x384xf32>
    %c1 = arith.constant 1 : index
    %c0_5 = arith.constant 0 : index
    %c0_6 = arith.constant 0 : index
    %8 = vector.load %arg3[%c1, %c0_5, %c0_6] : memref<4x4x384xf32, #tpu.memory_space<vmem>>, vector<1x4x384xf32>
    %9 = vector.shape_cast %8 : vector<1x4x384xf32> to vector<4x384xf32>
    %10 = vector.broadcast %7 : vector<1x384xf32> to vector<4x384xf32>
    %11 = arith.mulf %10, %9 : vector<4x384xf32>
    %12 = arith.addf %6, %11 : vector<4x384xf32>
    %13 = vector.extract_strided_slice %1 {offsets = [2, 0], sizes = [1, 384], strides = [1, 1]} : vector<4x384xf32> to vector<1x384xf32>
    %c2 = arith.constant 2 : index
    %c0_7 = arith.constant 0 : index
    %c0_8 = arith.constant 0 : index
    %14 = vector.load %arg3[%c2, %c0_7, %c0_8] : memref<4x4x384xf32, #tpu.memory_space<vmem>>, vector<1x4x384xf32>
    %15 = vector.shape_cast %14 : vector<1x4x384xf32> to vector<4x384xf32>
    %16 = vector.broadcast %13 : vector<1x384xf32> to vector<4x384xf32>
    %17 = arith.mulf %16, %15 : vector<4x384xf32>
    %18 = arith.addf %12, %17 : vector<4x384xf32>
    %19 = vector.extract_strided_slice %1 {offsets = [3, 0], sizes = [1, 384], strides = [1, 1]} : vector<4x384xf32> to vector<1x384xf32>
    %c3 = arith.constant 3 : index
    %c0_9 = arith.constant 0 : index
    %c0_10 = arith.constant 0 : index
    %20 = vector.load %arg3[%c3, %c0_9, %c0_10] : memref<4x4x384xf32, #tpu.memory_space<vmem>>, vector<1x4x384xf32>
    %21 = vector.shape_cast %20 : vector<1x4x384xf32> to vector<4x384xf32>
    %22 = vector.broadcast %19 : vector<1x384xf32> to vector<4x384xf32>
    %23 = arith.mulf %22, %21 : vector<4x384xf32>
    %24 = arith.addf %18, %23 : vector<4x384xf32>
    %c0_11 = arith.constant 0 : index
    %c0_12 = arith.constant 0 : index
    %c0_13 = arith.constant 0 : index
    %25 = vector.load %arg4[%c0_11, %c0_12, %c0_13] : memref<1x4x384xf32, #tpu.memory_space<vmem>>, vector<1x4x384xf32>
    %26 = vector.shape_cast %25 : vector<1x4x384xf32> to vector<4x384xf32>
    %27 = vector.shape_cast %24 : vector<4x384xf32> to vector<1x4x384xf32>
    tpu.vector_store %arg4[%c0_11, %c0_12, %c0_13], %27 {strides = array<i32>} : memref<1x4x384xf32, #tpu.memory_space<vmem>>, vector<1x4x384xf32>,
    return
  }
  func.func @transform_0(%arg0: i32, %arg1: i32) -> (i32, i32, i32) {
    %c0_i32 = arith.constant 0 : i32
    %c0_i32_0 = arith.constant 0 : i32
    %c0_i32_1 = arith.constant 0 : i32
    return %arg1, %c0_i32, %c0_i32_0 : i32, i32, i32
  }
  func.func @transform_1(%arg0: i32, %arg1: i32) -> (i32, i32, i32) {
    %c0_i32 = arith.constant 0 : i32
    %c0_i32_0 = arith.constant 0 : i32
    %c0_i32_1 = arith.constant 0 : i32
    return %c0_i32, %arg0, %c0_i32_0 : i32, i32, i32
  }
  func.func @transform_2(%arg0: i32, %arg1: i32) -> (i32, i32, i32) {
    %c0_i32 = arith.constant 0 : i32
    %c0_i32_0 = arith.constant 0 : i32
    return %arg1, %arg0, %c0_i32 : i32, i32, i32
  }
}

</mosaic_0001>

<llo_original>
// kernel: tpu_custom_call.1
$region0: #{tpu_custom_call.1}
  #allocation0 [shape = 'u32[]', space=smem, size = 0x4, offset = 0x4, fixed_abs, tag = 'smem constant byte address 0x4 - core index']
  #allocation1 [shape = 'u32[144,128]{1,0:T(1,128)}', space=vmem, size = 0x12000, scoped, tag = 'internal scratch']
  %s0 = inlined_call_operand.hbm [shape: f32[2,4,384], index: 0, kind: input, shape index: {}]
  %s1 = inlined_call_operand.hbm [shape: f32[4,4,384], index: 1, kind: input, shape index: {}]
  %s2 = inlined_call_operand.hbm [shape: f32[2,4,384], index: 2, kind: output, shape index: {}]
  %s3 = sld [smem:[#allocation0]]
  $region49: #{tpu_custom_call.1} parent=0
    _
  %s5 = ssub.s32 1, %s3
  %s6 = scalar_select 0, %s5, %s3
  $region1: #{tpu_custom_call.1} parent=0
    #allocation2 [shape = 'u8[12288]{0}', space=vmem, size = 0x3000, scoped, tag = 'input window, operand 0']
    #allocation3 [shape = 's32[2]{0}', space=sflag, size = 0x8, scoped, tag = 'scoped memory for tpu_custom_call.1']
    #allocation4 [shape = 's32[2]{0}', space=sflag, size = 0x8, scoped, tag = 'scoped memory for tpu_custom_call.1']
    #allocation5 [shape = 'u8[24576]{0}', space=vmem, size = 0x6000, scoped, tag = 'input window, operand 1, single buffered']
    #allocation6 [shape = 's32[1]{0}', space=sflag, size = 0x4, scoped, tag = 'scoped memory for tpu_custom_call.1']
    #allocation7 [shape = 'u8[12288]{0}', space=vmem, size = 0x3000, scoped, tag = 'output window, operand 0']
    %7 = vsyncpa [#allocation3], 0
    %s8 = scalar_lea.sflag [#allocation3], 1
    %9 = vsyncpa %s8, 0
    %10 = vsyncpa [#allocation6], 0
    %11 = vsyncpa [#allocation4], 0
    %s12 = scalar_lea.sflag [#allocation4], 1
    %13 = vsyncpa %s12, 0
    loop: start=0, step=1, limit=4
    $region2: #{tpu_custom_call.1} parent=1 // loop_pre_header
      _
    $region3: #{tpu_custom_call.1} parent=1 // loop_header
      %s15 = sphi 0, %s19
      %p16 = scmp.ge.s32.totalorder %s15, 4
      %s22 = sphi 0, %s34
      %s23 = sphi 0, %s30
      %s24 = sphi 0, %s22
      %s25 = sphi 0, %s23
      %s26 = sphi 0, %s24
      %s27 = sphi 0, %s25
      %s37 = sphi 0, %s39
      %s40 = sphi 0, %s37
      %s41 = sphi 0, %s40
      %s57 = sphi 0, %s41
      %s63 = sphi 0, %s65
      %s66 = sphi 0, %s63
      %s67 = sphi 0, %s66
      %s83 = sphi 0, %s67
      %s91 = sphi 0, %s93
      %s94 = sphi 0, %s91
      %s95 = sphi 0, %s94
      %s111 = sphi 0, %s95
    $region4: #{tpu_custom_call.1} parent=1 // loop_header_branch
      %18 = sbr.rel (%p16) target = $region8
    $region5: #{tpu_custom_call.1} parent=1 // loop_body
      %s20 = ssub.s32 %s15, 1
      %s21 = ssub.s32 %s15, 2
      %s28 = sadd.s32 1, %s23
      %p29 = scmp.ge.s32.totalorder %s28, 2
      %s30 = scalar_select %p29, 0, %s28
      %s31 = sadd.s32 1, %s22
      %s32 = scalar_select %p29, %s31, %s22
      %p33 = scmp.ge.s32.totalorder %s32, 1
      %s34 = scalar_select %p33, 0, %s32
      %s35 = ssub.s32 %s23, %s30
      %p36 = scmp.eq.s32.totalorder %s35, 0
      %s38 = sadd.s32 %s37, 1
      %s39 = scalar_select %p36, %s37, %s38
      %p42 = pneg %p36
      %p43 = scmp.eq.s32.totalorder %s15, 1
      %p44 = por %p42, %p43
      %p45 = scmp.ne.s32.totalorder %s37, %s40
      %p46 = scmp.eq.s32.totalorder %s15, 0
      %p47 = por %p45, %p46
      %p48 = scmp.ne.s32.totalorder %s37, %s40
      %p49 = scmp.eq.s32.totalorder %s20, 1
      %p50 = por %p48, %p49
      %p51 = scmp.ne.s32.totalorder %s40, %s41
      %p52 = scmp.eq.s32.totalorder %s20, 0
      %p53 = por %p51, %p52
      %p54 = scmp.ne.s32.totalorder %s40, %s41
      %p55 = scmp.eq.s32.totalorder %s21, 1
      %p56 = por %p54, %p55
      %p58 = scmp.ne.s32.totalorder %s41, %s57
      %p59 = scmp.eq.s32.totalorder %s21, 0
      %p60 = por %p58, %p59
      %s61 = ssub.s32 %s22, %s34
      %p62 = scmp.eq.s32.totalorder %s61, 0
      %s64 = sadd.s32 %s63, 1
      %s65 = scalar_select %p62, %s63, %s64
      %p68 = pneg %p62
      %p69 = scmp.eq.s32.totalorder %s15, 1
      %p70 = por %p68, %p69
      %p71 = scmp.ne.s32.totalorder %s63, %s66
      %p72 = scmp.eq.s32.totalorder %s15, 0
      %p73 = por %p71, %p72
      %p74 = scmp.ne.s32.totalorder %s63, %s66
      %p75 = scmp.eq.s32.totalorder %s20, 1
      %p76 = por %p74, %p75
      %p77 = scmp.ne.s32.totalorder %s66, %s67
      %p78 = scmp.eq.s32.totalorder %s20, 0
      %p79 = por %p77, %p78
      %p80 = scmp.ne.s32.totalorder %s66, %s67
      %p81 = scmp.eq.s32.totalorder %s21, 1
      %p82 = por %p80, %p81
      %p84 = scmp.ne.s32.totalorder %s67, %s83
      %p85 = scmp.eq.s32.totalorder %s21, 0
      %p86 = por %p84, %p85
      %s87 = ssub.s32 %s23, %s30
      %s88 = ssub.s32 %s22, %s34
      %s89 = sor.u32 %s87, %s88
      %p90 = scmp.eq.s32.totalorder %s89, 0
      %s92 = sadd.s32 %s91, 1
      %s93 = scalar_select %p90, %s91, %s92
      %p96 = pneg %p90
      %p97 = scmp.eq.s32.totalorder %s15, 1
      %p98 = por %p96, %p97
      %p99 = scmp.ne.s32.totalorder %s91, %s94
      %p100 = scmp.eq.s32.totalorder %s15, 0
      %p101 = por %p99, %p100
      %p102 = scmp.ne.s32.totalorder %s91, %s94
      %p103 = scmp.eq.s32.totalorder %s20, 1
      %p104 = por %p102, %p103
      %p105 = scmp.ne.s32.totalorder %s94, %s95
      %p106 = scmp.eq.s32.totalorder %s20, 0
      %p107 = por %p105, %p106
      %p108 = scmp.ne.s32.totalorder %s94, %s95
      %p109 = scmp.eq.s32.totalorder %s21, 1
      %p110 = por %p108, %p109
      %p112 = scmp.ne.s32.totalorder %s95, %s111
      %p113 = scmp.eq.s32.totalorder %s21, 0
      %p114 = por %p112, %p113
      %p115 = scmp.le.s32.totalorder 1, %s15
      %p116 = scmp.lt.s32.totalorder %s15, 3
      %p117 = pnand %p115, %p116
      %p118 = pneg %p117
      // Predicated region
      $region9: #{tpu_custom_call.1} parent=5 // pred_check
        _
      $region10: #{tpu_custom_call.1} parent=5 // pred_check_branch
        %120 = sbr.rel (%p117) target = $region12
      $region11: #{tpu_custom_call.1} parent=5 // pred_region
        %s121 = ssub.s32 %s15, 1
        // Predicated region
        $region13: #{tpu_custom_call.1} parent=11 // pred_check
          %p122 = pneg %p79
        $region14: #{tpu_custom_call.1} parent=11 // pred_check_branch
          %124 = sbr.rel (%p122) target = $region16
        $region15: #{tpu_custom_call.1} parent=11 // pred_region
          %s126 = ssub.s32 768, 768
          %127 = vsyncadd [#allocation6], %s126
          %s128 = smul.addr %s24, 3
          %s129 = smul.addr %s128, 64
          %s130 = scalar_lea.hbm %s1, %s129
          %s131 = sshll.u32 [#allocation5], 4
          %s132 = int_to_ptr.vmem [resolvable:$true] %s131
          %137 = dma.hbm_to_vmem [thread:$0]  %s130, 768, %s132, [#allocation6], 192, 192, 12
        $region16: #{tpu_custom_call.1} parent=11 // pred_fallthru
          _
      $region12: #{tpu_custom_call.1} parent=5 // pred_fallthru
        _
      %p138 = scmp.lt.s32.totalorder %s15, 2
      // Predicated region
      $region17: #{tpu_custom_call.1} parent=5 // pred_check
        %p139 = pneg %p138
      $region18: #{tpu_custom_call.1} parent=5 // pred_check_branch
        %141 = sbr.rel (%p139) target = $region20
      $region19: #{tpu_custom_call.1} parent=5 // pred_region
        // Predicated region
        $region21: #{tpu_custom_call.1} parent=19 // pred_check
          %p142 = pneg %p47
        $region22: #{tpu_custom_call.1} parent=19 // pred_check_branch
          %144 = sbr.rel (%p142) target = $region24
        $region23: #{tpu_custom_call.1} parent=19 // pred_region
          %s145 = sand.u32 %s37, 1
          %s146 = scalar_lea.sflag [#allocation3], %s145
          %s147 = sand.u32 %s37, 1
          %s148 = smul.addr %s147, 12
          %s149 = scalar_lea.vmem [#allocation2], %s148
          %s151 = ssub.s32 192, 192
          %152 = vsyncadd %s146, %s151
          %s153 = smul.addr %s23, 3
          %s154 = smul.addr %s153, 64
          %s155 = scalar_lea.hbm %s0, %s154
          %s157 = sshll.u32 %s149, 4
          %s158 = int_to_ptr.vmem [resolvable:$true] %s157
          %160 = dma.hbm_to_vmem [thread:$0]  %s155, 192, %s158, %s146
        $region24: #{tpu_custom_call.1} parent=19 // pred_fallthru
          _
      $region20: #{tpu_custom_call.1} parent=5 // pred_fallthru
        _
      %p161 = scmp.le.s32.totalorder 1, %s15
      %p162 = scmp.lt.s32.totalorder %s15, 3
      %p163 = pnand %p161, %p162
      %p164 = pneg %p163
      // Predicated region
      $region25: #{tpu_custom_call.1} parent=5 // pred_check
        _
      $region26: #{tpu_custom_call.1} parent=5 // pred_check_branch
        %166 = sbr.rel (%p163) target = $region28
      $region27: #{tpu_custom_call.1} parent=5 // pred_region
        %s167 = ssub.s32 %s15, 1
        %s168 = sand.u32 %s40, 1
        %s169 = scalar_lea.sflag [#allocation3], %s168
        %s170 = sand.u32 %s40, 1
        %s171 = smul.addr %s170, 12
        %s172 = scalar_lea.vmem [#allocation2], %s171
        // Predicated region
        $region29: #{tpu_custom_call.1} parent=27 // pred_check
          %p173 = pneg %p53
        $region30: #{tpu_custom_call.1} parent=27 // pred_check_branch
          %175 = sbr.rel (%p173) target = $region32
        $region31: #{tpu_custom_call.1} parent=27 // pred_region
          %176 = dma.done %s169, 192
        $region32: #{tpu_custom_call.1} parent=27 // pred_fallthru
          _
        // Predicated region
        $region33: #{tpu_custom_call.1} parent=27 // pred_check
          %p177 = pneg %p79
        $region34: #{tpu_custom_call.1} parent=27 // pred_check_branch
          %179 = sbr.rel (%p177) target = $region36
        $region35: #{tpu_custom_call.1} parent=27 // pred_region
          %180 = dma.done [#allocation6], 768
        $region36: #{tpu_custom_call.1} parent=27 // pred_fallthru
          _
        %s181 = sand.u32 %s40, 1
        %s182 = scalar_lea.sflag [#allocation3], %s181
        %s183 = sand.u32 %s40, 1
        %s184 = smul.addr %s183, 12
        %s185 = scalar_lea.vmem [#allocation2], %s184
        %p186 = pneg %p53
        %p187 = pneg %p50
        %p188 = pneg %p79
        %p189 = pneg %p76
        %p190 = pneg %p107
        %p191 = pneg %p104
        %s192 = sand.u32 %s94, 1
        %s193 = scalar_lea.sflag [#allocation4], %s192
        %s194 = sand.u32 %s94, 1
        %s195 = smul.addr %s194, 12
        %s196 = scalar_lea.vmem [#allocation7], %s195
        %v197 = vld [vmem:[%s172] sm:$0xff]
        %v198 = vld [vmem:[%s172 + $0x8] sm:$0xf]
        %v199 = vld [vmem:[#allocation5] sm:$0xff]
        %v200 = vld [vmem:[#allocation5 + $0x8] sm:$0xf]
        %v203 = vlaneseq
        %v204 = vshrl.u32 %v203, 7
        %v205 = vsub.s32 0, %v204
        %v206 = vrot.slane %v197, %v205
        %v207 = vlaneseq
        %v208 = vshrl.u32 %v207, 7
        %v209 = vsub.s32 4, %v208
        %v210 = vrot.slane %v197, %v209
        %v211 = vlaneseq
        %v212 = vshrl.u32 %v211, 7
        %v213 = vsub.s32 0, %v212
        %v214 = vrot.slane %v198, %v213
        %v218 = vlaneseq
        %v219 = vshrl.u32 %v218, 7
        %v220 = vsub.s32 0, %v219
        %v221 = vrot.slane %v206, %v220
        %v222 = vlaneseq
        %v223 = vshrl.u32 %v222, 7
        %v224 = vsub.s32 0, %v223
        %v225 = vrot.slane %v210, %v224
        %v226 = vlaneseq
        %v227 = vshrl.u32 %v226, 7
        %v228 = vsub.s32 0, %v227
        %v229 = vrot.slane %v214, %v228
        %v231 = vcombine.high %v199, %v199
        %v233 = vmul.f32 %v221, %v199
        %v234 = vmul.f32 %v225, %v231
        %v235 = vmul.f32 %v229, %v200
        %s236 = scalar_lea.vmem [#allocation5], 12
        %v237 = vld [vmem:[%s236] sm:$0xff]
        %v238 = vld [vmem:[%s236 + $0x8] sm:$0xf]
        %v239 = vlaneseq
        %v240 = vshrl.u32 %v239, 7
        %v241 = vsub.s32 1, %v240
        %v242 = vrot.slane %v197, %v241
        %v243 = vlaneseq
        %v244 = vshrl.u32 %v243, 7
        %v245 = vsub.s32 5, %v244
        %v246 = vrot.slane %v197, %v245
        %v247 = vlaneseq
        %v248 = vshrl.u32 %v247, 7
        %v249 = vsub.s32 1, %v248
        %v250 = vrot.slane %v198, %v249
        %v254 = vlaneseq
        %v255 = vshrl.u32 %v254, 7
        %v256 = vsub.s32 1, %v255
        %v257 = vrot.slane %v242, %v256
        %v258 = vlaneseq
        %v259 = vshrl.u32 %v258, 7
        %v260 = vsub.s32 1, %v259
        %v261 = vrot.slane %v246, %v260
        %v262 = vlaneseq
        %v263 = vshrl.u32 %v262, 7
        %v264 = vsub.s32 1, %v263
        %v265 = vrot.slane %v250, %v264
        %v267 = vcombine.high %v237, %v237
        %v269 = vmul.f32 %v257, %v237
        %v270 = vmul.f32 %v261, %v267
        %v271 = vmul.f32 %v265, %v238
        %v272 = vadd.f32 %v233, %v269
        %v273 = vadd.f32 %v234, %v270
        %v274 = vadd.f32 %v235, %v271
        %s275 = scalar_lea.vmem [#allocation5], 24
        %v276 = vld [vmem:[%s275] sm:$0xff]
        %v277 = vld [vmem:[%s275 + $0x8] sm:$0xf]
        %v278 = vlaneseq
        %v279 = vshrl.u32 %v278, 7
        %v280 = vsub.s32 2, %v279
        %v281 = vrot.slane %v197, %v280
        %v282 = vlaneseq
        %v283 = vshrl.u32 %v282, 7
        %v284 = vsub.s32 6, %v283
        %v285 = vrot.slane %v197, %v284
        %v286 = vlaneseq
        %v287 = vshrl.u32 %v286, 7
        %v288 = vsub.s32 2, %v287
        %v289 = vrot.slane %v198, %v288
        %v293 = vlaneseq
        %v294 = vshrl.u32 %v293, 7
        %v295 = vsub.s32 2, %v294
        %v296 = vrot.slane %v281, %v295
        %v297 = vlaneseq
        %v298 = vshrl.u32 %v297, 7
        %v299 = vsub.s32 2, %v298
        %v300 = vrot.slane %v285, %v299
        %v301 = vlaneseq
        %v302 = vshrl.u32 %v301, 7
        %v303 = vsub.s32 2, %v302
        %v304 = vrot.slane %v289, %v303
        %v306 = vcombine.high %v276, %v276
        %v308 = vmul.f32 %v296, %v276
        %v309 = vmul.f32 %v300, %v306
        %v310 = vmul.f32 %v304, %v277
        %v311 = vadd.f32 %v272, %v308
        %v312 = vadd.f32 %v273, %v309
        %v313 = vadd.f32 %v274, %v310
        %s314 = scalar_lea.vmem [#allocation5], 36
        %v315 = vld [vmem:[%s314] sm:$0xff]
        %v316 = vld [vmem:[%s314 + $0x8] sm:$0xf]
        %v317 = vlaneseq
        %v318 = vshrl.u32 %v317, 7
        %v319 = vsub.s32 3, %v318
        %v320 = vrot.slane %v197, %v319
        %v321 = vlaneseq
        %v322 = vshrl.u32 %v321, 7
        %v323 = vsub.s32 7, %v322
        %v324 = vrot.slane %v197, %v323
        %v325 = vlaneseq
        %v326 = vshrl.u32 %v325, 7
        %v327 = vsub.s32 3, %v326
        %v328 = vrot.slane %v198, %v327
        %v332 = vlaneseq
        %v333 = vshrl.u32 %v332, 7
        %v334 = vsub.s32 3, %v333
        %v335 = vrot.slane %v320, %v334
        %v336 = vlaneseq
        %v337 = vshrl.u32 %v336, 7
        %v338 = vsub.s32 3, %v337
        %v339 = vrot.slane %v324, %v338
        %v340 = vlaneseq
        %v341 = vshrl.u32 %v340, 7
        %v342 = vsub.s32 3, %v341
        %v343 = vrot.slane %v328, %v342
        %v345 = vcombine.high %v315, %v315
        %v347 = vmul.f32 %v335, %v315
        %v348 = vmul.f32 %v339, %v345
        %v349 = vmul.f32 %v343, %v316
        %v350 = vadd.f32 %v311, %v347
        %v351 = vadd.f32 %v312, %v348
        %v352 = vadd.f32 %v313, %v349
        %v355 = vcombine.low %v350, %v351
        %357 = vst [vmem:[%s196] sm:$0xff] %v355
        %358 = vst [vmem:[%s196 + $0x8] sm:$0xf] %v352
        %s359 = sand.u32 %s94, 1
        %s360 = scalar_lea.sflag [#allocation4], %s359
        %s361 = sand.u32 %s94, 1
        %s362 = smul.addr %s361, 12
        %s363 = scalar_lea.vmem [#allocation7], %s362
        // Predicated region
        $region37: #{tpu_custom_call.1} parent=27 // pred_check
          %p364 = pneg %p104
        $region38: #{tpu_custom_call.1} parent=27 // pred_check_branch
          %366 = sbr.rel (%p364) target = $region40
        $region39: #{tpu_custom_call.1} parent=27 // pred_region
          %s368 = ssub.s32 192, 192
          %369 = vsyncadd %s360, %s368
          %s370 = smul.addr %s24, 3
          %s371 = smul.addr %s25, 3
          %s372 = sadd.s32 %s370, %s371
          %s373 = smul.addr %s372, 64
          %s374 = scalar_lea.hbm %s2, %s373
          %s376 = sshll.u32 %s363, 4
          %s377 = int_to_ptr.vmem [resolvable:$true] %s376
          %379 = dma.vmem_to_hbm [thread:$0]  %s377, 192, %s374, %s360
        $region40: #{tpu_custom_call.1} parent=27 // pred_fallthru
          _
      $region28: #{tpu_custom_call.1} parent=5 // pred_fallthru
        _
      %p380 = scmp.le.s32.totalorder 2, %s15
      // Predicated region
      $region41: #{tpu_custom_call.1} parent=5 // pred_check
        %p381 = pneg %p380
      $region42: #{tpu_custom_call.1} parent=5 // pred_check_branch
        %383 = sbr.rel (%p381) target = $region44
      $region43: #{tpu_custom_call.1} parent=5 // pred_region
        %s384 = ssub.s32 %s15, 2
        // Predicated region
        $region45: #{tpu_custom_call.1} parent=43 // pred_check
          %p385 = pneg %p110
        $region46: #{tpu_custom_call.1} parent=43 // pred_check_branch
          %387 = sbr.rel (%p385) target = $region48
        $region47: #{tpu_custom_call.1} parent=43 // pred_region
          %s388 = sand.u32 %s95, 1
          %s389 = scalar_lea.sflag [#allocation4], %s388
          %s390 = sand.u32 %s95, 1
          %s391 = smul.addr %s390, 12
          %s392 = scalar_lea.vmem [#allocation7], %s391
          %393 = dma.done %s389, 192
        $region48: #{tpu_custom_call.1} parent=43 // pred_fallthru
          _
      $region44: #{tpu_custom_call.1} parent=5 // pred_fallthru
        _
    $region6: #{tpu_custom_call.1} parent=1 // loop_footer
      %s19 = sadd.s32 1, %s15
    $region7: #{tpu_custom_call.1} parent=1 // loop_footer_branch
      %14 = sbr.rel target = $region3
    $region8: #{tpu_custom_call.1} parent=1 // loop_exit
      _
    %394 = vsyncpa [#allocation3], 1
    %s395 = scalar_lea.sflag [#allocation3], 1
    %396 = vsyncpa %s395, 1
    %397 = vsyncpa [#allocation6], 1
    %398 = vsyncpa [#allocation4], 1
    %s399 = scalar_lea.sflag [#allocation4], 1
    %400 = vsyncpa %s399, 1

</llo_original>
